<compile_context>
chip_gen: v6e
topology: v6e:2x2x1
jax: 0.10.0
libtpu: 0.0.40
codegen_flags: <defaults>
</compile_context>

<pallas_src>
import functools
import math

import jax
import jax.numpy as jnp
from jax.experimental import pallas as pl
from jax.experimental.pallas import tpu as pltpu

EPSILON = 1e-6
LOG_STD_MAX = 2.0
LOG_STD_MIN = -20.0
NN_LAYER_1 = 400
NN_LAYER_2 = 300
_HALF_LOG_2PI = 0.5 * math.log(2.0 * math.pi)


def _round_up(x, m):
    return ((x + m - 1) // m) * m


def policy_sac_kernel(eps_ref,            # SMEM (1,1) f32 : scalar N(0,1) draw
                      x_ref,              # (tb, num_inputs) f32
                      w1_ref, b1_ref,     # (num_inputs, 512) bf16, (1, 512) f32
                      w2_ref, b2_ref,     # (512, 384) bf16,        (1, 384) f32
                      wh_ref, bh_ref,     # (384, 2*apad) bf16,     (1, 2*apad) f32
                      out_ref,            # (tb, 2*apad) f32 : [action | log_prob]
                      *, apad):
    eps = eps_ref[0, 0]
    cd = w1_ref.dtype                     # MXU compute dtype (bf16); accum is f32

    h1 = jnp.dot(x_ref[...].astype(cd), w1_ref[...],
                 preferred_element_type=jnp.float32) + b1_ref[...]
    h1 = jnp.maximum(h1, 0.0)

    h2 = jnp.dot(h1.astype(cd), w2_ref[...],
                 preferred_element_type=jnp.float32) + b2_ref[...]
    h2 = jnp.maximum(h2, 0.0)

    # Fused mean/log_std head: one MXU pass, then 128-lane-aligned slices.
    head = jnp.dot(h2.astype(cd), wh_ref[...],
                   preferred_element_type=jnp.float32) + bh_ref[...]
    mean = head[:, :apad]
    log_std = jnp.clip(head[:, apad:], LOG_STD_MIN, LOG_STD_MAX)

    std = jnp.exp(log_std)
    z = mean + std * eps
    action = jnp.tanh(z)

    # Normal(mean, std).log_prob(z) with z - mean == std * eps (exact algebra):
    #   -0.5*eps^2 - log_std - 0.5*log(2*pi)
    norm_const = -0.5 * eps * eps - _HALF_LOG_2PI
    log_prob = (norm_const - log_std) - jnp.log(1.0 - action * action + EPSILON)

    out_ref[:, :apad] = action.astype(out_ref.dtype)
    out_ref[:, apad:] = log_prob.astype(out_ref.dtype)


def init_params(key, num_inputs, num_actions):
    """Deterministic init matching nn.Linear shapes (weights stored (in, out))."""
    def linear_init(k, fan_in, fan_out):
        kw, kb = jax.random.split(k)
        bound = 1.0 / jnp.sqrt(jnp.float32(fan_in))
        w = jax.random.uniform(kw, (fan_in, fan_out), jnp.float32, -bound, bound)
        b = jax.random.uniform(kb, (1, fan_out), jnp.float32, -bound, bound)
        return w, b

    k1, k2, k3, k4 = jax.random.split(key, 4)
    w1, b1 = linear_init(k1, num_inputs, NN_LAYER_1)
    w2, b2 = linear_init(k2, NN_LAYER_1, NN_LAYER_2)
    wm, bm = linear_init(k3, NN_LAYER_2, num_actions)
    ws, bs = linear_init(k4, NN_LAYER_2, num_actions)
    return {"w1": w1, "b1": b1, "w2": w2, "b2": b2,
            "wm": wm, "bm": bm, "ws": ws, "bs": bs}


def pack_params(params, compute_dtype=jnp.bfloat16):
    """Pad hidden widths to 128-multiples, fuse the two heads, cast weights to bf16.

    Zero padding is exact: padded h1/h2 columns are relu(0) = 0 and contribute
    nothing to downstream matmuls; padded head columns give mean=0, log_std=0.
    """
    w1, b1 = params["w1"], params["b1"]
    w2, b2 = params["w2"], params["b2"]
    wm, bm = params["wm"], params["bm"]
    ws, bs = params["ws"], params["bs"]

    num_inputs, h1_dim = w1.shape
    h2_dim = w2.shape[1]
    num_actions = wm.shape[1]

    h1p = _round_up(h1_dim, 128)          # 400 -> 512
    h2p = _round_up(h2_dim, 128)          # 300 -> 384
    apad = _round_up(num_actions, 128)    # A   -> 128

    w1p = jnp.zeros((num_inputs, h1p), jnp.float32).at[:, :h1_dim].set(w1)
    b1p = jnp.zeros((1, h1p), jnp.float32).at[:, :h1_dim].set(b1.reshape(1, -1))
    w2p = jnp.zeros((h1p, h2p), jnp.float32).at[:h1_dim, :h2_dim].set(w2)
    b2p = jnp.zeros((1, h2p), jnp.float32).at[:, :h2_dim].set(b2.reshape(1, -1))

    whp = jnp.zeros((h2p, 2 * apad), jnp.float32)
    whp = whp.at[:h2_dim, :num_actions].set(wm)
    whp = whp.at[:h2_dim, apad:apad + num_actions].set(ws)
    bhp = jnp.zeros((1, 2 * apad), jnp.float32)
    bhp = bhp.at[:, :num_actions].set(bm.reshape(1, -1))
    bhp = bhp.at[:, apad:apad + num_actions].set(bs.reshape(1, -1))

    return {
        "w1": w1p.astype(compute_dtype), "b1": b1p,
        "w2": w2p.astype(compute_dtype), "b2": b2p,
        "wh": whp.astype(compute_dtype), "bh": bhp,
    }


def policy_network_sac_forward(state, packed, eps_scalar, num_actions, *, block_b=256):
    """state: (B, num_inputs) f32. packed: pack_params() output. eps_scalar: () f32."""
    B, num_inputs = state.shape
    apad = packed["wh"].shape[1] // 2

    # Batch tile: multiple of 8 sublanes, capped so h1/h2 tiles stay small
    # (fits well under the 32 MiB scoped-VMEM default, incl. v7x's 64 MiB VMEM).
    tb = min(block_b, _round_up(B, 8))
    tb = _round_up(tb, 8)
    bpad = _round_up(B, tb)
    if bpad != B:
        state = jnp.pad(state, ((0, bpad - B), (0, 0)))
    grid = (bpad // tb,)

    eps = jnp.reshape(eps_scalar.astype(jnp.float32), (1, 1))
    kernel = functools.partial(policy_sac_kernel, apad=apad)

    # TODO(synk): for tiny batches this call is weight-DMA/launch bound; in a real
    # SAC loop keep the packed weights resident across calls (cross-call prefetch).
    out = pl.pallas_call(
        kernel,
        out_shape=jax.ShapeDtypeStruct((bpad, 2 * apad), jnp.float32),
        grid=grid,
        in_specs=[
            pl.BlockSpec(memory_space=pltpu.MemorySpace.SMEM),       # eps scalar
            pl.BlockSpec((tb, num_inputs), lambda i: (i, 0)),        # x tile
            pl.BlockSpec(packed["w1"].shape, lambda i: (0, 0)),      # resident weights
            pl.BlockSpec(packed["b1"].shape, lambda i: (0, 0)),
            pl.BlockSpec(packed["w2"].shape, lambda i: (0, 0)),
            pl.BlockSpec(packed["b2"].shape, lambda i: (0, 0)),
            pl.BlockSpec(packed["wh"].shape, lambda i: (0, 0)),
            pl.BlockSpec(packed["bh"].shape, lambda i: (0, 0)),
        ],
        out_specs=pl.BlockSpec((tb, 2 * apad), lambda i: (i, 0)),
        compiler_params=pltpu.CompilerParams(
            dimension_semantics=("parallel",)),
    )(eps, state,
      packed["w1"], packed["b1"],
      packed["w2"], packed["b2"],
      packed["wh"], packed["bh"])

    action = out[:B, :num_actions]
    log_prob = out[:B, apad:apad + num_actions]
    return action, log_prob


def reference_forward(state, params, eps_scalar, compute_dtype=jnp.bfloat16):
    """Pure-JAX reference with the same bf16-matmul / f32-accumulate precision,
    using the original (torch-style) log-prob formula."""
    def dot(a, w):
        return jnp.dot(a.astype(compute_dtype), w.astype(compute_dtype),
                       preferred_element_type=jnp.float32)

    h1 = jnp.maximum(dot(state, params["w1"]) + params["b1"], 0.0)
    h2 = jnp.maximum(dot(h1, params["w2"]) + params["b2"], 0.0)
    mean = dot(h2, params["wm"]) + params["bm"]
    log_std = jnp.clip(dot(h2, params["ws"]) + params["bs"], LOG_STD_MIN, LOG_STD_MAX)
    std = jnp.exp(log_std)
    z = mean + std * eps_scalar
    action = jnp.tanh(z)
    normal_logp = (-((z - mean) ** 2) / (2.0 * std * std)
                   - log_std - 0.5 * jnp.log(2.0 * jnp.pi))
    log_prob = normal_logp - jnp.log(1.0 - action * action + EPSILON)
    return action, log_prob


if __name__ == "__main__":
    key = jax.random.PRNGKey(0)
    k_params, k_state, k_eps, k_state2 = jax.random.split(key, 4)

    batch = 2
    num_inputs = 16
    num_actions = 8

    params = init_params(k_params, num_inputs, num_actions)
    packed = pack_params(params)
    state = jax.random.normal(k_state, (batch, num_inputs), jnp.float32)
    # Single scalar sample from Normal(0, 1), matching torch's normal.sample()
    eps_scalar = jax.random.normal(k_eps, (), jnp.float32)

    fwd = jax.jit(functools.partial(policy_network_sac_forward,
                                    num_actions=num_actions))
    action, log_prob = fwd(state, packed, eps_scalar)
    action = jax.block_until_ready(action)
    log_prob = jax.block_until_ready(log_prob)

    ref_action, ref_log_prob = reference_forward(state, params, eps_scalar)
    assert action.shape == (batch, num_actions)
    assert log_prob.shape == (batch, num_actions)
    assert jnp.allclose(action, ref_action, atol=1e-3, rtol=1e-3)
    assert jnp.allclose(log_prob, ref_log_prob, atol=1e-3, rtol=1e-3)

    # Second check: non-trivial batch exercising multi-step grid + batch padding.
    batch2 = 40
    state2 = jax.random.normal(k_state2, (batch2, num_inputs), jnp.float32)
    fwd2 = jax.jit(functools.partial(policy_network_sac_forward,
                                     num_actions=num_actions, block_b=16))
    action2, log_prob2 = fwd2(state2, packed, eps_scalar)
    action2 = jax.block_until_ready(action2)
    log_prob2 = jax.block_until_ready(log_prob2)

    ref_action2, ref_log_prob2 = reference_forward(state2, params, eps_scalar)
    assert action2.shape == (batch2, num_actions)
    assert log_prob2.shape == (batch2, num_actions)
    assert jnp.allclose(action2, ref_action2, atol=1e-3, rtol=1e-3)
    assert jnp.allclose(log_prob2, ref_log_prob2, atol=1e-3, rtol=1e-3)

    print("KERNEL_OK")
</pallas_src>

<mosaic_0001>
module attributes {stable_mosaic.version = 11 : i64} {
  func.func @policy_sac_kernel(%arg0: i32, %arg1: memref<1x1xf32, #tpu.memory_space<smem>>, %arg2: memref<8x16xf32, #tpu.memory_space<vmem>>, %arg3: memref<16x512xbf16, #tpu.memory_space<vmem>>, %arg4: memref<1x512xf32, #tpu.memory_space<vmem>>, %arg5: memref<512x384xbf16, #tpu.memory_space<vmem>>, %arg6: memref<1x384xf32, #tpu.memory_space<vmem>>, %arg7: memref<384x256xbf16, #tpu.memory_space<vmem>>, %arg8: memref<1x256xf32, #tpu.memory_space<vmem>>, %arg9: memref<8x256xf32, #tpu.memory_space<vmem>>) attributes {dimension_semantics = [#tpu.dimension_semantics<parallel>], iteration_bounds = array<i64: 1>, scalar_prefetch = 0 : i64, scratch_operands = 0 : i64, tpu.core_type = #tpu.core_type<tc>, window_params = [{transform_indices = @transform_0, window_bounds = array<i64: 1, 1>}, {transform_indices = @transform_1, window_bounds = array<i64: 8, 16>}, {pipeline_mode = #tpu.pipeline_mode<synchronous>, transform_indices = @transform_2, window_bounds = array<i64: 16, 512>}, {pipeline_mode = #tpu.pipeline_mode<synchronous>, transform_indices = @transform_3, window_bounds = array<i64: 1, 512>}, {pipeline_mode = #tpu.pipeline_mode<synchronous>, transform_indices = @transform_4, window_bounds = array<i64: 512, 384>}, {pipeline_mode = #tpu.pipeline_mode<synchronous>, transform_indices = @transform_5, window_bounds = array<i64: 1, 384>}, {pipeline_mode = #tpu.pipeline_mode<synchronous>, transform_indices = @transform_6, window_bounds = array<i64: 384, 256>}, {pipeline_mode = #tpu.pipeline_mode<synchronous>, transform_indices = @transform_7, window_bounds = array<i64: 1, 256>}, {transform_indices = @transform_8, window_bounds = array<i64: 8, 256>}]} {
    %c0 = arith.constant 0 : index
    %c0_0 = arith.constant 0 : index
    %0 = memref.load %arg1[%c0, %c0_0] : memref<1x1xf32, #tpu.memory_space<smem>>
    %c0_1 = arith.constant 0 : index
    %c0_2 = arith.constant 0 : index
    %1 = vector.load %arg2[%c0_1, %c0_2] : memref<8x16xf32, #tpu.memory_space<vmem>>, vector<8x16xf32>
    %2 = arith.truncf %1 : vector<8x16xf32> to vector<8x16xbf16>
    %c0_3 = arith.constant 0 : index
    %c0_4 = arith.constant 0 : index
    %3 = vector.load %arg3[%c0_3, %c0_4] : memref<16x512xbf16, #tpu.memory_space<vmem>>, vector<16x512xbf16>
    %cst = arith.constant dense<0.000000e+00> : vector<8x512xf32>
    %4 = tpu.matmul %2, %3, %cst {dimension_numbers = #tpu.dot_dimension_numbers<[1], [0], [0], [1], [0, 0, 1, 1], [], []>} : vector<8x16xbf16>, vector<16x512xbf16>, vector<8x512xf32> -> vector<8x512xf32>
    %c0_5 = arith.constant 0 : index
    %c0_6 = arith.constant 0 : index
    %5 = vector.load %arg4[%c0_5, %c0_6] : memref<1x512xf32, #tpu.memory_space<vmem>>, vector<1x512xf32>
    %6 = vector.broadcast %5 : vector<1x512xf32> to vector<8x512xf32>
    %7 = arith.addf %4, %6 : vector<8x512xf32>
    %cst_7 = arith.constant 0.000000e+00 : f32
    %8 = vector.broadcast %cst_7 : f32 to vector<8x512xf32>
    %9 = arith.maximumf %7, %8 : vector<8x512xf32>
    %10 = arith.truncf %9 : vector<8x512xf32> to vector<8x512xbf16>
    %c0_8 = arith.constant 0 : index
    %c0_9 = arith.constant 0 : index
    %11 = vector.load %arg5[%c0_8, %c0_9] : memref<512x384xbf16, #tpu.memory_space<vmem>>, vector<512x384xbf16>
    %cst_10 = arith.constant dense<0.000000e+00> : vector<8x384xf32>
    %12 = tpu.matmul %10, %11, %cst_10 {dimension_numbers = #tpu.dot_dimension_numbers<[1], [0], [0], [1], [0, 0, 1, 1], [], []>} : vector<8x512xbf16>, vector<512x384xbf16>, vector<8x384xf32> -> vector<8x384xf32>
    %c0_11 = arith.constant 0 : index
    %c0_12 = arith.constant 0 : index
    %13 = vector.load %arg6[%c0_11, %c0_12] : memref<1x384xf32, #tpu.memory_space<vmem>>, vector<1x384xf32>
    %14 = vector.broadcast %13 : vector<1x384xf32> to vector<8x384xf32>
    %15 = arith.addf %12, %14 : vector<8x384xf32>
    %cst_13 = arith.constant 0.000000e+00 : f32
    %16 = vector.broadcast %cst_13 : f32 to vector<8x384xf32>
    %17 = arith.maximumf %15, %16 : vector<8x384xf32>
    %18 = arith.truncf %17 : vector<8x384xf32> to vector<8x384xbf16>
    %c0_14 = arith.constant 0 : index
    %c0_15 = arith.constant 0 : index
    %19 = vector.load %arg7[%c0_14, %c0_15] : memref<384x256xbf16, #tpu.memory_space<vmem>>, vector<384x256xbf16>
    %cst_16 = arith.constant dense<0.000000e+00> : vector<8x256xf32>
    %20 = tpu.matmul %18, %19, %cst_16 {dimension_numbers = #tpu.dot_dimension_numbers<[1], [0], [0], [1], [0, 0, 1, 1], [], []>} : vector<8x384xbf16>, vector<384x256xbf16>, vector<8x256xf32> -> vector<8x256xf32>
    %c0_17 = arith.constant 0 : index
    %c0_18 = arith.constant 0 : index
    %21 = vector.load %arg8[%c0_17, %c0_18] : memref<1x256xf32, #tpu.memory_space<vmem>>, vector<1x256xf32>
    %22 = vector.broadcast %21 : vector<1x256xf32> to vector<8x256xf32>
    %23 = arith.addf %20, %22 : vector<8x256xf32>
    %24 = vector.extract_strided_slice %23 {offsets = [0, 0], sizes = [8, 128], strides = [1, 1]} : vector<8x256xf32> to vector<8x128xf32>
    %25 = vector.extract_strided_slice %23 {offsets = [0, 128], sizes = [8, 128], strides = [1, 1]} : vector<8x256xf32> to vector<8x128xf32>
    %cst_19 = arith.constant -2.000000e+01 : f32
    %cst_20 = arith.constant 2.000000e+00 : f32
    %26 = vector.broadcast %cst_19 : f32 to vector<8x128xf32>
    %27 = arith.maximumf %26, %25 : vector<8x128xf32>
    %28 = vector.broadcast %cst_20 : f32 to vector<8x128xf32>
    %29 = arith.minimumf %28, %27 : vector<8x128xf32>
    %30 = math.exp %29 : vector<8x128xf32>
    %31 = vector.broadcast %0 : f32 to vector<8x128xf32>
    %32 = arith.mulf %30, %31 : vector<8x128xf32>
    %33 = arith.addf %24, %32 : vector<8x128xf32>
    %34 = math.tanh %33 : vector<8x128xf32>
    %cst_21 = arith.constant -5.000000e-01 : f32
    %35 = arith.mulf %cst_21, %0 : f32
    %36 = arith.mulf %35, %0 : f32
    %cst_22 = arith.constant 0.918938517 : f32
    %37 = arith.subf %36, %cst_22 : f32
    %38 = vector.broadcast %37 : f32 to vector<8x128xf32>
    %39 = arith.subf %38, %29 : vector<8x128xf32>
    %40 = arith.mulf %34, %34 : vector<8x128xf32>
    %cst_23 = arith.constant 1.000000e+00 : f32
    %41 = vector.broadcast %cst_23 : f32 to vector<8x128xf32>
    %42 = arith.subf %41, %40 : vector<8x128xf32>
    %cst_24 = arith.constant 9.99999997E-7 : f32
    %43 = vector.broadcast %cst_24 : f32 to vector<8x128xf32>
    %44 = arith.addf %42, %43 : vector<8x128xf32>
    %45 = math.log %44 : vector<8x128xf32>
    %46 = arith.subf %39, %45 : vector<8x128xf32>
    %c0_25 = arith.constant 0 : index
    %c0_26 = arith.constant 0 : index
    %47 = vector.load %arg9[%c0_25, %c0_26] : memref<8x256xf32, #tpu.memory_space<vmem>>, vector<8x128xf32>
    tpu.vector_store %arg9[%c0_25, %c0_26], %34 {strides = array<i32>} : memref<8x256xf32, #tpu.memory_space<vmem>>, vector<8x128xf32>,
    %c0_27 = arith.constant 0 : index
    %c128 = arith.constant 128 : index
    %48 = vector.load %arg9[%c0_27, %c128] : memref<8x256xf32, #tpu.memory_space<vmem>>, vector<8x128xf32>
    tpu.vector_store %arg9[%c0_27, %c128], %46 {strides = array<i32>} : memref<8x256xf32, #tpu.memory_space<vmem>>, vector<8x128xf32>,
    return
  }
  func.func @transform_0(%arg0: i32) -> (i32, i32) {
    %c0_i32 = arith.constant 0 : i32
    %c0_i32_0 = arith.constant 0 : i32
    %c0_i32_1 = arith.constant 0 : i32
    return %c0_i32, %c0_i32_0 : i32, i32
  }
  func.func @transform_1(%arg0: i32) -> (i32, i32) {
    %c0_i32 = arith.constant 0 : i32
    %c0_i32_0 = arith.constant 0 : i32
    return %arg0, %c0_i32 : i32, i32
  }
  func.func @transform_2(%arg0: i32) -> (i32, i32) {
    %c0_i32 = arith.constant 0 : i32
    %c0_i32_0 = arith.constant 0 : i32
    %c0_i32_1 = arith.constant 0 : i32
    return %c0_i32, %c0_i32_0 : i32, i32
  }
  func.func @transform_3(%arg0: i32) -> (i32, i32) {
    %c0_i32 = arith.constant 0 : i32
    %c0_i32_0 = arith.constant 0 : i32
    %c0_i32_1 = arith.constant 0 : i32
    return %c0_i32, %c0_i32_0 : i32, i32
  }
  func.func @transform_4(%arg0: i32) -> (i32, i32) {
    %c0_i32 = arith.constant 0 : i32
    %c0_i32_0 = arith.constant 0 : i32
    %c0_i32_1 = arith.constant 0 : i32
    return %c0_i32, %c0_i32_0 : i32, i32
  }
  func.func @transform_5(%arg0: i32) -> (i32, i32) {
    %c0_i32 = arith.constant 0 : i32
    %c0_i32_0 = arith.constant 0 : i32
    %c0_i32_1 = arith.constant 0 : i32
    return %c0_i32, %c0_i32_0 : i32, i32
  }
  func.func @transform_6(%arg0: i32) -> (i32, i32) {
    %c0_i32 = arith.constant 0 : i32
    %c0_i32_0 = arith.constant 0 : i32
    %c0_i32_1 = arith.constant 0 : i32
    return %c0_i32, %c0_i32_0 : i32, i32
  }
  func.func @transform_7(%arg0: i32) -> (i32, i32) {
    %c0_i32 = arith.constant 0 : i32
    %c0_i32_0 = arith.constant 0 : i32
    %c0_i32_1 = arith.constant 0 : i32
    return %c0_i32, %c0_i32_0 : i32, i32
  }
  func.func @transform_8(%arg0: i32) -> (i32, i32) {
    %c0_i32 = arith.constant 0 : i32
    %c0_i32_0 = arith.constant 0 : i32
    return %arg0, %c0_i32 : i32, i32
  }
}

</mosaic_0001>

<llo_original>
// kernel: policy_network_sac_forward.1
$region0: #{policy_network_sac_forward.1}
  #allocation0 [shape = 'u32[]', space=smem, size = 0x4, offset = 0x4, fixed_abs, tag = 'smem constant byte address 0x4 - core index']
  #allocation1 [shape = 'u32[144,128]{1,0:T(1,128)}', space=vmem, size = 0x12000, scoped, tag = 'internal scratch']
  #allocation2 [shape = 'f32[1,1]{1,0:T(1,128)S(6)}', space=smem, size = 0x200, scoped, tag = 'scoped memory for policy_network_sac_forward.1']
  %s0 = inlined_call_operand.<no memory space> [shape: f32[1,1], index: 0, kind: input, shape index: {}]
  %s1 = inlined_call_operand.vmem [shape: f32[8,16], index: 1, kind: input, shape index: {}]
  %s2 = inlined_call_operand.hbm [shape: bf16[16,512], index: 2, kind: input, shape index: {}]
  %s3 = inlined_call_operand.vmem [shape: f32[1,512], index: 3, kind: input, shape index: {}]
  %s4 = inlined_call_operand.hbm [shape: bf16[512,384], index: 4, kind: input, shape index: {}]
  %s5 = inlined_call_operand.vmem [shape: f32[1,384], index: 5, kind: input, shape index: {}]
  %s6 = inlined_call_operand.hbm [shape: bf16[384,256], index: 6, kind: input, shape index: {}]
  %s7 = inlined_call_operand.vmem [shape: f32[1,256], index: 7, kind: input, shape index: {}]
  %s8 = inlined_call_operand.vmem [shape: f32[8,256], index: 8, kind: output, shape index: {}]
  %s9 = sld [smem:[#allocation0]]
  $region54: #{policy_network_sac_forward.1} parent=0
    _
  %s11 = ssub.s32 1, %s9
  %s12 = scalar_select 0, %s11, %s9
  %13 = sst [smem:[#allocation2]] %s0
  $region1: #{policy_network_sac_forward.1} parent=0
    #allocation3 [shape = 'u8[16384]{0}', space=vmem, size = 0x4000, scoped, tag = 'input window, operand 2, single buffered']
    #allocation4 [shape = 's32[1]{0}', space=sflag, size = 0x4, scoped, tag = 'scoped memory for policy_network_sac_forward.1']
    #allocation5 [shape = 'u8[393216]{0}', space=vmem, size = 0x60000, scoped, tag = 'input window, operand 4, single buffered']
    #allocation6 [shape = 's32[1]{0}', space=sflag, size = 0x4, scoped, tag = 'scoped memory for policy_network_sac_forward.1']
    #allocation7 [shape = 'u8[196608]{0}', space=vmem, size = 0x30000, scoped, tag = 'input window, operand 6, single buffered']
    %14 = vsyncpa [#allocation4], 0
    %15 = vsyncpa [#allocation6], 0
    // Predicated region
    $region2: #{policy_network_sac_forward.1} parent=1 // pred_check
      _
    $region3: #{policy_network_sac_forward.1} parent=1 // pred_check_branch
      %17 = sbr.rel (0) target = $region5
    $region4: #{policy_network_sac_forward.1} parent=1 // pred_region
      _
    $region5: #{policy_network_sac_forward.1} parent=1 // pred_fallthru
      _
    // Predicated region
    $region6: #{policy_network_sac_forward.1} parent=1 // pred_check
      _
    $region7: #{policy_network_sac_forward.1} parent=1 // pred_check_branch
      %19 = sbr.rel (0) target = $region9
    $region8: #{policy_network_sac_forward.1} parent=1 // pred_region
      _
    $region9: #{policy_network_sac_forward.1} parent=1 // pred_fallthru
      _
    // Predicated region
    $region10: #{policy_network_sac_forward.1} parent=1 // pred_check
      _
    $region11: #{policy_network_sac_forward.1} parent=1 // pred_check_branch
      %21 = sbr.rel (0) target = $region13
    $region12: #{policy_network_sac_forward.1} parent=1 // pred_region
      %s23 = ssub.s32 512, 512
      %24 = vsyncadd [#allocation4], %s23
      %s25 = sshll.u32 [#allocation3], 4
      %s26 = int_to_ptr.vmem [resolvable:$true] %s25
      %31 = dma.hbm_to_vmem [thread:$0]  %s2, 512, %s26, [#allocation4], 256, 256, 16
    $region13: #{policy_network_sac_forward.1} parent=1 // pred_fallthru
      _
    // Predicated region
    $region14: #{policy_network_sac_forward.1} parent=1 // pred_check
      _
    $region15: #{policy_network_sac_forward.1} parent=1 // pred_check_branch
      %33 = sbr.rel (0) target = $region17
    $region16: #{policy_network_sac_forward.1} parent=1 // pred_region
      _
    $region17: #{policy_network_sac_forward.1} parent=1 // pred_fallthru
      _
    // Predicated region
    $region18: #{policy_network_sac_forward.1} parent=1 // pred_check
      _
    $region19: #{policy_network_sac_forward.1} parent=1 // pred_check_branch
      %35 = sbr.rel (0) target = $region21
    $region20: #{policy_network_sac_forward.1} parent=1 // pred_region
      %s37 = ssub.s32 12288, 12288
      %38 = vsyncadd [#allocation6], %s37
      %s39 = sshll.u32 [#allocation5], 4
      %s40 = int_to_ptr.vmem [resolvable:$true] %s39
      %45 = dma.hbm_to_vmem [thread:$0]  %s4, 12288, %s40, [#allocation6], 192, 192, 12
    $region21: #{policy_network_sac_forward.1} parent=1 // pred_fallthru
      _
    // Predicated region
    $region22: #{policy_network_sac_forward.1} parent=1 // pred_check
      _
    $region23: #{policy_network_sac_forward.1} parent=1 // pred_check_branch
      %47 = sbr.rel (0) target = $region25
    $region24: #{policy_network_sac_forward.1} parent=1 // pred_region
      _
    $region25: #{policy_network_sac_forward.1} parent=1 // pred_fallthru
      _
    // Predicated region
    $region26: #{policy_network_sac_forward.1} parent=1 // pred_check
      _
    $region27: #{policy_network_sac_forward.1} parent=1 // pred_check_branch
      %49 = sbr.rel (0) target = $region29
    $region28: #{policy_network_sac_forward.1} parent=1 // pred_region
      %s51 = ssub.s32 6144, 6144
      %52 = vsyncadd [#allocation6], %s51
      %s53 = sshll.u32 [#allocation7], 4
      %s54 = int_to_ptr.vmem [resolvable:$true] %s53
      %59 = dma.hbm_to_vmem [thread:$0]  %s6, 6144, %s54, [#allocation6], 128, 128, 8
    $region29: #{policy_network_sac_forward.1} parent=1 // pred_fallthru
      _
    // Predicated region
    $region30: #{policy_network_sac_forward.1} parent=1 // pred_check
      _
    $region31: #{policy_network_sac_forward.1} parent=1 // pred_check_branch
      %61 = sbr.rel (0) target = $region33
    $region32: #{policy_network_sac_forward.1} parent=1 // pred_region
      _
    $region33: #{policy_network_sac_forward.1} parent=1 // pred_fallthru
      _
    // Predicated region
    $region34: #{policy_network_sac_forward.1} parent=1 // pred_check
      _
    $region35: #{policy_network_sac_forward.1} parent=1 // pred_check_branch
      %63 = sbr.rel (0) target = $region37
    $region36: #{policy_network_sac_forward.1} parent=1 // pred_region
      %64 = dma.done [#allocation4], 512
    $region37: #{policy_network_sac_forward.1} parent=1 // pred_fallthru
      _
    // Predicated region
    $region38: #{policy_network_sac_forward.1} parent=1 // pred_check
      _
    $region39: #{policy_network_sac_forward.1} parent=1 // pred_check_branch
      %66 = sbr.rel (0) target = $region41
    $region40: #{policy_network_sac_forward.1} parent=1 // pred_region
      %67 = dma.done [#allocation6], 12288
    $region41: #{policy_network_sac_forward.1} parent=1 // pred_fallthru
      _
    // Predicated region
    $region42: #{policy_network_sac_forward.1} parent=1 // pred_check
      _
    $region43: #{policy_network_sac_forward.1} parent=1 // pred_check_branch
      %69 = sbr.rel (0) target = $region45
    $region44: #{policy_network_sac_forward.1} parent=1 // pred_region
      %70 = dma.done [#allocation6], 6144
    $region45: #{policy_network_sac_forward.1} parent=1 // pred_fallthru
      _
    %s72 = sld [smem:[#allocation2]]
    %v73 = vld [vmem:[%s1] sm:$0xff]
    %v74 = vpack.c.bf16 %v73, %v73
    %v75 = vld [vmem:[#allocation3] sm:$0xff]
    %v76 = vld [vmem:[#allocation3 + $0x8] sm:$0xff]
    %v77 = vld [vmem:[#allocation3 + $0x10] sm:$0xff]
    %v78 = vld [vmem:[#allocation3 + $0x18] sm:$0xff]
    %v79 = vld [vmem:[%s3] sm:$0xf]
    %v81 = vlaneseq
    %v82 = vshrl.u32 %v81, 7
    %v83 = vsub.s32 0, %v82
    %v84 = vrot.slane %v79, %v83
    %v85 = vlaneseq
    %v86 = vshrl.u32 %v85, 7
    %v87 = vsub.s32 1, %v86
    %v88 = vrot.slane %v79, %v87
    %v89 = vlaneseq
    %v90 = vshrl.u32 %v89, 7
    %v91 = vsub.s32 2, %v90
    %v92 = vrot.slane %v79, %v91
    %v93 = vlaneseq
    %v94 = vshrl.u32 %v93, 7
    %v95 = vsub.s32 3, %v94
    %v96 = vrot.slane %v79, %v95
    %v105 = vunpack.c.l.b16 %v75
    %v106 = vunpack.c.h.b16 %v75
    %v107 = vunpack.c.l.b16 %v76
    %v108 = vunpack.c.h.b16 %v76
    %v109 = vunpack.c.l.b16 %v77
    %v110 = vunpack.c.h.b16 %v77
    %v111 = vunpack.c.l.b16 %v78
    %v112 = vunpack.c.h.b16 %v78
    %v113 = vpack.c.b16 %v109, %v105
    %v114 = vpack.c.b16 %v110, %v106
    %v115 = vpack.c.b16 %v111, %v107
    %v116 = vpack.c.b16 %v112, %v108
    %vm121 = vcmask 130048
    %v123 = vsel %vm121, %v74, 0
    %125 = vmatprep.subr.bf16.mxu0 0
    %126 = vmatpush1.bf16.msra.mxu0 0
    %127 = vmatprep.subr.bf16.mxu0 0
    %128 = vmatpush1.bf16.msra.mxu0 0
    %129 = vmatprep.subr.bf16.mxu0 0
    %130 = vmatpush1.bf16.msra.mxu0 0
    %131 = vmatprep.subr.bf16.mxu0 0
    %132 = vmatpush1.bf16.msra.mxu0 0
    %133 = vmatprep.subr.bf16.mxu0 0
    %134 = vmatpush1.bf16.msra.mxu0 0
    %135 = vmatprep.subr.bf16.mxu0 0
    %136 = vmatpush1.bf16.msra.mxu0 0
    %137 = vmatprep.subr.bf16.mxu0 0
    %138 = vmatpush1.bf16.msra.mxu0 0
    %139 = vmatprep.subr.bf16.mxu0 %v114
    %140 = vmatpush1.bf16.msra.mxu0 %v113
    %141 = vmatprep.subr.bf16.mxu0 0
    %142 = vmatpush2.bf16.msra.mxu0 0
    %143 = vmatprep.subr.bf16.mxu0 0
    %144 = vmatpush2.bf16.msra.mxu0 0
    %145 = vmatprep.subr.bf16.mxu0 0
    %146 = vmatpush2.bf16.msra.mxu0 0
    %147 = vmatprep.subr.bf16.mxu0 0
    %148 = vmatpush2.bf16.msra.mxu0 0
    %149 = vmatprep.subr.bf16.mxu0 0
    %150 = vmatpush2.bf16.msra.mxu0 0
    %151 = vmatprep.subr.bf16.mxu0 0
    %152 = vmatpush2.bf16.msra.mxu0 0
    %153 = vmatprep.subr.bf16.mxu0 0
    %154 = vmatpush2.bf16.msra.mxu0 0
    %155 = vmatprep.subr.bf16.mxu0 0
    %156 = vmatpush2.bf16.msra.mxu0 0
    %157 = vmatprep.mubr.bf16.mxu0 0
    %158 = vmatmul.mubr.bf16.gmra.mxu0 %v123
    %v159 = vpop.f32.mrf.mxu0
    %v160 = vadd.f32 %v84, %v159
    %v161 = vpop.f32.mrf.mxu0
    %v162 = vadd.f32 %v88, %v161
    %v163 = vpop.f32.mrf.mxu0
    %v164 = vpop.f32.mrf.mxu0
    %165 = vdwg.mxu0
    %166 = vmatprep.subr.bf16.mxu0 0
    %167 = vmatpush1.bf16.msra.mxu0 0
    %168 = vmatprep.subr.bf16.mxu0 0
    %169 = vmatpush1.bf16.msra.mxu0 0
    %170 = vmatprep.subr.bf16.mxu0 0
    %171 = vmatpush1.bf16.msra.mxu0 0
    %172 = vmatprep.subr.bf16.mxu0 0
    %173 = vmatpush1.bf16.msra.mxu0 0
    %174 = vmatprep.subr.bf16.mxu0 0
    %175 = vmatpush1.bf16.msra.mxu0 0
    %176 = vmatprep.subr.bf16.mxu0 0
    %177 = vmatpush1.bf16.msra.mxu0 0
    %178 = vmatprep.subr.bf16.mxu0 0
    %179 = vmatpush1.bf16.msra.mxu0 0
    %180 = vmatprep.subr.bf16.mxu0 %v116
    %181 = vmatpush1.bf16.msra.mxu0 %v115
    %182 = vmatprep.subr.bf16.mxu0 0
    %183 = vmatpush2.bf16.msra.mxu0 0
    %184 = vmatprep.subr.bf16.mxu0 0
    %185 = vmatpush2.bf16.msra.mxu0 0
    %186 = vmatprep.subr.bf16.mxu0 0
    %187 = vmatpush2.bf16.msra.mxu0 0
    %188 = vmatprep.subr.bf16.mxu0 0
    %189 = vmatpush2.bf16.msra.mxu0 0
    %190 = vmatprep.subr.bf16.mxu0 0
    %191 = vmatpush2.bf16.msra.mxu0 0
    %192 = vmatprep.subr.bf16.mxu0 0
    %193 = vmatpush2.bf16.msra.mxu0 0
    %194 = vmatprep.subr.bf16.mxu0 0
    %195 = vmatpush2.bf16.msra.mxu0 0
    %196 = vmatprep.subr.bf16.mxu0 0
    %197 = vmatpush2.bf16.msra.mxu0 0
    %198 = vmatprep.mubr.bf16.mxu0 0
    %199 = vmatmul.mubr.bf16.gmra.mxu0 %v123
    %v200 = vpop.f32.mrf.mxu0
    %v201 = vadd.f32 %v92, %v200
    %v202 = vpop.f32.mrf.mxu0
    %v203 = vadd.f32 %v96, %v202
    %v204 = vpop.f32.mrf.mxu0
    %v205 = vpop.f32.mrf.mxu0
    %206 = vdwg.mxu0
    %v207 = vmax.f32 %v160, 0.0
    %v208 = vmax.f32 %v162, 0.0
    %v209 = vmax.f32 %v201, 0.0
    %v210 = vmax.f32 %v203, 0.0
    %v211 = vpack.c.bf16 %v207, %v207
    %v212 = vpack.c.bf16 %v208, %v208
    %v213 = vpack.c.bf16 %v209, %v209
    %v214 = vpack.c.bf16 %v210, %v210
    %v215 = vld [vmem:[#allocation5] sm:$0xff]
    %v216 = vld [vmem:[#allocation5 + $0x8] sm:$0xf]
    %v217 = vld [vmem:[#allocation5 + $0xc] sm:$0xff]
    %v218 = vld [vmem:[#allocation5 + $0x14] sm:$0xf]
    %v219 = vld [vmem:[#allocation5 + $0x18] sm:$0xff]
    %v220 = vld [vmem:[#allocation5 + $0x20] sm:$0xf]
    %v221 = vld [vmem:[#allocation5 + $0x24] sm:$0xff]
    %v222 = vld [vmem:[#allocation5 + $0x2c] sm:$0xf]
    %v223 = vld [vmem:[#allocation5 + $0x30] sm:$0xff]
    %v224 = vld [vmem:[#allocation5 + $0x38] sm:$0xf]
    %v225 = vld [vmem:[#allocation5 + $0x3c] sm:$0xff]
    %v226 = vld [vmem:[#allocation5 + $0x44] sm:$0xf]
    %v227 = vld [vmem:[#allocation5 + $0x48] sm:$0xff]
    %v228 = vld [vmem:[#allocation5 + $0x50] sm:$0xf]
    %v229 = vld [vmem:[#allocation5 + $0x54] sm:$0xff]
    %v230 = vld [vmem:[#allocation5 + $0x5c] sm:$0xf]
    %v231 = vld [vmem:[#allocation5 + $0x60] sm:$0xff]
    %v232 = vld [vmem:[#allocation5 + $0x68] sm:$0xf]
    %v233 = vld [vmem:[#allocation5 + $0x6c] sm:$0xff]
    %v234 = vld [vmem:[#allocation5 + $0x74] sm:$0xf]
    %v235 = vld [vmem:[#allocation5 + $0x78] sm:$0xff]
    %v236 = vld [vmem:[#allocation5 + $0x80] sm:$0xf]
    %v237 = vld [vmem:[#allocation5 + $0x84] sm:$0xff]
    %v238 = vld [vmem:[#allocation5 + $0x8c] sm:$0xf]
    %v239 = vld [vmem:[#allocation5 + $0x90] sm:$0xff]
    %v240 = vld [vmem:[#allocation5 + $0x98] sm:$0xf]
    %v241 = vld [vmem:[#allocation5 + $0x9c] sm:$0xff]
    %v242 = vld [vmem:[#allocation5 + $0xa4] sm:$0xf]
    %v243 = vld [vmem:[#allocation5 + $0xa8] sm:$0xff]
    %v244 = vld [vmem:[#allocation5 + $0xb0] sm:$0xf]
    %v245 = vld [vmem:[#allocation5 + $0xb4] sm:$0xff]
    %v246 = vld [vmem:[#allocation5 + $0xbc] sm:$0xf]
    %v247 = vld [vmem:[#allocation5 + $0xc0] sm:$0xff]
    %v248 = vld [vmem:[#allocation5 + $0xc8] sm:$0xf]
    %v249 = vld [vmem:[#allocation5 + $0xcc] sm:$0xff]
    %v250 = vld [vmem:[#allocation5 + $0xd4] sm:$0xf]
    %v251 = vld [vmem:[#allocation5 + $0xd8] sm:$0xff]
    %v252 = vld [vmem:[#allocation5 + $0xe0] sm:$0xf]
    %v253 = vld [vmem:[#allocation5 + $0xe4] sm:$0xff]
    %v254 = vld [vmem:[#allocation5 + $0xec] sm:$0xf]
    %v255 = vld [vmem:[#allocation5 + $0xf0] sm:$0xff]
    %v256 = vld [vmem:[#allocation5 + $0xf8] sm:$0xf]
    %v257 = vld [vmem:[#allocation5 + $0xfc] sm:$0xff]
    %v258 = vld [vmem:[#allocation5 + $0x104] sm:$0xf]
    %v259 = vld [vmem:[#allocation5 + $0x108] sm:$0xff]
    %v260 = vld [vmem:[#allocation5 + $0x110] sm:$0xf]
    %v261 = vld [vmem:[#allocation5 + $0x114] sm:$0xff]
    %v262 = vld [vmem:[#allocation5 + $0x11c] sm:$0xf]
    %v263 = vld [vmem:[#allocation5 + $0x120] sm:$0xff]
    %v264 = vld [vmem:[#allocation5 + $0x128] sm:$0xf]
    %v265 = vld [vmem:[#allocation5 + $0x12c] sm:$0xff]
    %v266 = vld [vmem:[#allocation5 + $0x134] sm:$0xf]
    %v267 = vld [vmem:[#allocation5 + $0x138] sm:$0xff]
    %v268 = vld [vmem:[#allocation5 + $0x140] sm:$0xf]
    %v269 = vld [vmem:[#allocation5 + $0x144] sm:$0xff]
    %v270 = vld [vmem:[#allocation5 + $0x14c] sm:$0xf]
    %v271 = vld [vmem:[#allocation5 + $0x150] sm:$0xff]
    %v272 = vld [vmem:[#allocation5 + $0x158] sm:$0xf]
    %v273 = vld [vmem:[#allocation5 + $0x15c] sm:$0xff]
    %v274 = vld [vmem:[#allocation5 + $0x164] sm:$0xf]
    %v275 = vld [vmem:[#allocation5 + $0x168] sm:$0xff]
    %v276 = vld [vmem:[#allocation5 + $0x170] sm:$0xf]
    %v277 = vld [vmem:[#allocation5 + $0x174] sm:$0xff]
    %v278 = vld [vmem:[#allocation5 + $0x17c] sm:$0xf]
    %v279 = vld [vmem:[#allocation5 + $0x180] sm:$0xff]
    %v280 = vld [vmem:[#allocation5 + $0x188] sm:$0xf]
    %v281 = vld [vmem:[#allocation5 + $0x18c] sm:$0xff]
    %v282 = vld [vmem:[#allocation5 + $0x194] sm:$0xf]
    %v283 = vld [vmem:[#allocation5 + $0x198] sm:$0xff]
    %v284 = vld [vmem:[#allocation5 + $0x1a0] sm:$0xf]
    %v285 = vld [vmem:[#allocation5 + $0x1a4] sm:$0xff]
    %v286 = vld [vmem:[#allocation5 + $0x1ac] sm:$0xf]
    %v287 = vld [vmem:[#allocation5 + $0x1b0] sm:$0xff]
    %v288 = vld [vmem:[#allocation5 + $0x1b8] sm:$0xf]
    %v289 = vld [vmem:[#allocation5 + $0x1bc] sm:$0xff]
    %v290 = vld [vmem:[#allocation5 + $0x1c4] sm:$0xf]
    %v291 = vld [vmem:[#allocation5 + $0x1c8] sm:$0xff]
    %v292 = vld [vmem:[#allocation5 + $0x1d0] sm:$0xf]
    %v293 = vld [vmem:[#allocation5 + $0x1d4] sm:$0xff]
    %v294 = vld [vmem:[#allocation5 + $0x1dc] sm:$0xf]
    %v295 = vld [vmem:[#allocation5 + $0x1e0] sm:$0xff]
    %v296 = vld [vmem:[#allocation5 + $0x1e8] sm:$0xf]
    %v297 = vld [vmem:[#allocation5 + $0x1ec] sm:$0xff]
    %v298 = vld [vmem:[#allocation5 + $0x1f4] sm:$0xf]
    %v299 = vld [vmem:[#allocation5 + $0x1f8] sm:$0xff]
    %v300 = vld [vmem:[#allocation5 + $0x200] sm:$0xf]
    %v301 = vld [vmem:[#allocation5 + $0x204] sm:$0xff]
    %v302 = vld [vmem:[#allocation5 + $0x20c] sm:$0xf]
    %v303 = vld [vmem:[#allocation5 + $0x210] sm:$0xff]
    %v304 = vld [vmem:[#allocation5 + $0x218] sm:$0xf]
    %v305 = vld [vmem:[#allocation5 + $0x21c] sm:$0xff]
    %v306 = vld [vmem:[#allocation5 + $0x224] sm:$0xf]
    %v307 = vld [vmem:[#allocation5 + $0x228] sm:$0xff]
    %v308 = vld [vmem:[#allocation5 + $0x230] sm:$0xf]
    %v309 = vld [vmem:[#allocation5 + $0x234] sm:$0xff]
    %v310 = vld [vmem:[#allocation5 + $0x23c] sm:$0xf]
    %v311 = vld [vmem:[#allocation5 + $0x240] sm:$0xff]
    %v312 = vld [vmem:[#allocation5 + $0x248] sm:$0xf]
    %v313 = vld [vmem:[#allocation5 + $0x24c] sm:$0xff]
    %v314 = vld [vmem:[#allocation5 + $0x254] sm:$0xf]
    %v315 = vld [vmem:[#allocation5 + $0x258] sm:$0xff]
    %v316 = vld [vmem:[#allocation5 + $0x260] sm:$0xf]
    %v317 = vld [vmem:[#allocation5 + $0x264] sm:$0xff]
    %v318 = vld [vmem:[#allocation5 + $0x26c] sm:$0xf]
    %v319 = vld [vmem:[#allocation5 + $0x270] sm:$0xff]
    %v320 = vld [vmem:[#allocation5 + $0x278] sm:$0xf]
    %v321 = vld [vmem:[#allocation5 + $0x27c] sm:$0xff]
    %v322 = vld [vmem:[#allocation5 + $0x284] sm:$0xf]
    %v323 = vld [vmem:[#allocation5 + $0x288] sm:$0xff]
    %v324 = vld [vmem:[#allocation5 + $0x290] sm:$0xf]
    %v325 = vld [vmem:[#allocation5 + $0x294] sm:$0xff]
    %v326 = vld [vmem:[#allocation5 + $0x29c] sm:$0xf]
    %v327 = vld [vmem:[#allocation5 + $0x2a0] sm:$0xff]
    %v328 = vld [vmem:[#allocation5 + $0x2a8] sm:$0xf]
    %v329 = vld [vmem:[#allocation5 + $0x2ac] sm:$0xff]
    %v330 = vld [vmem:[#allocation5 + $0x2b4] sm:$0xf]
    %v331 = vld [vmem:[#allocation5 + $0x2b8] sm:$0xff]
    %v332 = vld [vmem:[#allocation5 + $0x2c0] sm:$0xf]
    %v333 = vld [vmem:[#allocation5 + $0x2c4] sm:$0xff]
    %v334 = vld [vmem:[#allocation5 + $0x2cc] sm:$0xf]
    %v335 = vld [vmem:[#allocation5 + $0x2d0] sm:$0xff]
    %v336 = vld [vmem:[#allocation5 + $0x2d8] sm:$0xf]
    %v337 = vld [vmem:[#allocation5 + $0x2dc] sm:$0xff]
    %v338 = vld [vmem:[#allocation5 + $0x2e4] sm:$0xf]
    %v339 = vld [vmem:[#allocation5 + $0x2e8] sm:$0xff]
    %v340 = vld [vmem:[#allocation5 + $0x2f0] sm:$0xf]
    %v341 = vld [vmem:[#allocation5 + $0x2f4] sm:$0xff]
    %v342 = vld [vmem:[#allocation5 + $0x2fc] sm:$0xf]
    %v343 = vld [vmem:[%s5] sm:$0x7]
    %v345 = vlaneseq
    %v346 = vshrl.u32 %v345, 7
    %v347 = vsub.s32 0, %v346
    %v348 = vrot.slane %v343, %v347
    %v349 = vlaneseq
    %v350 = vshrl.u32 %v349, 7
    %v351 = vsub.s32 1, %v350
    %v352 = vrot.slane %v343, %v351
    %v353 = vlaneseq
    %v354 = vshrl.u32 %v353, 7
    %v355 = vsub.s32 2, %v354
    %v356 = vrot.slane %v343, %v355
    %v488 = vunpack.c.l.b16 %v215
    %v489 = vunpack.c.h.b16 %v215
    %v490 = vunpack.c.l.b16 %v216
    %v491 = vunpack.c.l.b16 %v217
    %v492 = vunpack.c.h.b16 %v217
    %v493 = vunpack.c.l.b16 %v218
    %v494 = vunpack.c.l.b16 %v219
    %v495 = vunpack.c.h.b16 %v219
    %v496 = vunpack.c.l.b16 %v220
    %v497 = vunpack.c.l.b16 %v221
    %v498 = vunpack.c.h.b16 %v221
    %v499 = vunpack.c.l.b16 %v222
    %v500 = vunpack.c.l.b16 %v223
    %v501 = vunpack.c.h.b16 %v223
    %v502 = vunpack.c.l.b16 %v224
    %v503 = vunpack.c.l.b16 %v225
    %v504 = vunpack.c.h.b16 %v225
    %v505 = vunpack.c.l.b16 %v226
    %v506 = vunpack.c.l.b16 %v227
    %v507 = vunpack.c.h.b16 %v227
    %v508 = vunpack.c.l.b16 %v228
    %v509 = vunpack.c.l.b16 %v229
    %v510 = vunpack.c.h.b16 %v229
    %v511 = vunpack.c.l.b16 %v230
    %v512 = vunpack.c.l.b16 %v231
    %v513 = vunpack.c.h.b16 %v231
    %v514 = vunpack.c.l.b16 %v232
    %v515 = vunpack.c.l.b16 %v233
    %v516 = vunpack.c.h.b16 %v233
    %v517 = vunpack.c.l.b16 %v234
    %v518 = vunpack.c.l.b16 %v235
    %v519 = vunpack.c.h.b16 %v235
    %v520 = vunpack.c.l.b16 %v236
    %v521 = vunpack.c.l.b16 %v237
    %v522 = vunpack.c.h.b16 %v237
    %v523 = vunpack.c.l.b16 %v238
    %v524 = vunpack.c.l.b16 %v239
    %v525 = vunpack.c.h.b16 %v239
    %v526 = vunpack.c.l.b16 %v240
    %v527 = vunpack.c.l.b16 %v241
    %v528 = vunpack.c.h.b16 %v241
    %v529 = vunpack.c.l.b16 %v242
    %v530 = vunpack.c.l.b16 %v243
    %v531 = vunpack.c.h.b16 %v243
    %v532 = vunpack.c.l.b16 %v244
    %v533 = vunpack.c.l.b16 %v245
    %v534 = vunpack.c.h.b16 %v245
    %v535 = vunpack.c.l.b16 %v246
    %v536 = vunpack.c.l.b16 %v247
    %v537 = vunpack.c.h.b16 %v247
    %v538 = vunpack.c.l.b16 %v248
    %v539 = vunpack.c.l.b16 %v249
    %v540 = vunpack.c.h.b16 %v249
    %v541 = vunpack.c.l.b16 %v250
    %v542 = vunpack.c.l.b16 %v251
    %v543 = vunpack.c.h.b16 %v251
    %v544 = vunpack.c.l.b16 %v252
    %v545 = vunpack.c.l.b16 %v253
    %v546 = vunpack.c.h.b16 %v253
    %v547 = vunpack.c.l.b16 %v254
    %v548 = vunpack.c.l.b16 %v255
    %v549 = vunpack.c.h.b16 %v255
    %v550 = vunpack.c.l.b16 %v256
    %v551 = vunpack.c.l.b16 %v257
    %v552 = vunpack.c.h.b16 %v257
    %v553 = vunpack.c.l.b16 %v258
    %v554 = vunpack.c.l.b16 %v259
    %v555 = vunpack.c.h.b16 %v259
    %v556 = vunpack.c.l.b16 %v260
    %v557 = vunpack.c.l.b16 %v261
    %v558 = vunpack.c.h.b16 %v261
    %v559 = vunpack.c.l.b16 %v262
    %v560 = vunpack.c.l.b16 %v263
    %v561 = vunpack.c.h.b16 %v263
    %v562 = vunpack.c.l.b16 %v264
    %v563 = vunpack.c.l.b16 %v265
    %v564 = vunpack.c.h.b16 %v265
    %v565 = vunpack.c.l.b16 %v266
    %v566 = vunpack.c.l.b16 %v267
    %v567 = vunpack.c.h.b16 %v267
    %v568 = vunpack.c.l.b16 %v268
    %v569 = vunpack.c.l.b16 %v269
    %v570 = vunpack.c.h.b16 %v269
    %v571 = vunpack.c.l.b16 %v270
    %v572 = vunpack.c.l.b16 %v271
    %v573 = vunpack.c.h.b16 %v271
    %v574 = vunpack.c.l.b16 %v272
    %v575 = vunpack.c.l.b16 %v273
    %v576 = vunpack.c.h.b16 %v273
    %v577 = vunpack.c.l.b16 %v274
    %v578 = vunpack.c.l.b16 %v275
    %v579 = vunpack.c.h.b16 %v275
    %v580 = vunpack.c.l.b16 %v276
    %v581 = vunpack.c.l.b16 %v277
    %v582 = vunpack.c.h.b16 %v277
    %v583 = vunpack.c.l.b16 %v278
    %v584 = vunpack.c.l.b16 %v279
    %v585 = vunpack.c.h.b16 %v279
    %v586 = vunpack.c.l.b16 %v280
    %v587 = vunpack.c.l.b16 %v281
    %v588 = vunpack.c.h.b16 %v281
    %v589 = vunpack.c.l.b16 %v282
    %v590 = vunpack.c.l.b16 %v283
    %v591 = vunpack.c.h.b16 %v283
    %v592 = vunpack.c.l.b16 %v284
    %v593 = vunpack.c.l.b16 %v285
    %v594 = vunpack.c.h.b16 %v285
    %v595 = vunpack.c.l.b16 %v286
    %v596 = vunpack.c.l.b16 %v287
    %v597 = vunpack.c.h.b16 %v287
    %v598 = vunpack.c.l.b16 %v288
    %v599 = vunpack.c.l.b16 %v289
    %v600 = vunpack.c.h.b16 %v289
    %v601 = vunpack.c.l.b16 %v290
    %v602 = vunpack.c.l.b16 %v291
    %v603 = vunpack.c.h.b16 %v291
    %v604 = vunpack.c.l.b16 %v292
    %v605 = vunpack.c.l.b16 %v293
    %v606 = vunpack.c.h.b16 %v293
    %v607 = vunpack.c.l.b16 %v294
    %v608 = vunpack.c.l.b16 %v295
    %v609 = vunpack.c.h.b16 %v295
    %v610 = vunpack.c.l.b16 %v296
    %v611 = vunpack.c.l.b16 %v297
    %v612 = vunpack.c.h.b16 %v297
    %v613 = vunpack.c.l.b16 %v298
    %v614 = vunpack.c.l.b16 %v299
    %v615 = vunpack.c.h.b16 %v299
    %v616 = vunpack.c.l.b16 %v300
    %v617 = vunpack.c.l.b16 %v301
    %v618 = vunpack.c.h.b16 %v301
    %v619 = vunpack.c.l.b16 %v302
    %v620 = vunpack.c.l.b16 %v303
    %v621 = vunpack.c.h.b16 %v303
    %v622 = vunpack.c.l.b16 %v304
    %v623 = vunpack.c.l.b16 %v305
    %v624 = vunpack.c.h.b16 %v305
    %v625 = vunpack.c.l.b16 %v306
    %v626 = vunpack.c.l.b16 %v307
    %v627 = vunpack.c.h.b16 %v307
    %v628 = vunpack.c.l.b16 %v308
    %v629 = vunpack.c.l.b16 %v309
    %v630 = vunpack.c.h.b16 %v309
    %v631 = vunpack.c.l.b16 %v310
    %v632 = vunpack.c.l.b16 %v311
    %v633 = vunpack.c.h.b16 %v311
    %v634 = vunpack.c.l.b16 %v312
    %v635 = vunpack.c.l.b16 %v313
    %v636 = vunpack.c.h.b16 %v313
    %v637 = vunpack.c.l.b16 %v314
    %v638 = vunpack.c.l.b16 %v315
    %v639 = vunpack.c.h.b16 %v315
    %v640 = vunpack.c.l.b16 %v316
    %v641 = vunpack.c.l.b16 %v317
    %v642 = vunpack.c.h.b16 %v317
    %v643 = vunpack.c.l.b16 %v318
    %v644 = vunpack.c.l.b16 %v319
    %v645 = vunpack.c.h.b16 %v319
    %v646 = vunpack.c.l.b16 %v320
    %v647 = vunpack.c.l.b16 %v321
    %v648 = vunpack.c.h.b16 %v321
    %v649 = vunpack.c.l.b16 %v322
    %v650 = vunpack.c.l.b16 %v323
    %v651 = vunpack.c.h.b16 %v323
    %v652 = vunpack.c.l.b16 %v324
    %v653 = vunpack.c.l.b16 %v325
    %v654 = vunpack.c.h.b16 %v325
    %v655 = vunpack.c.l.b16 %v326
    %v656 = vunpack.c.l.b16 %v327
    %v657 = vunpack.c.h.b16 %v327
    %v658 = vunpack.c.l.b16 %v328
    %v659 = vunpack.c.l.b16 %v329
    %v660 = vunpack.c.h.b16 %v329
    %v661 = vunpack.c.l.b16 %v330
    %v662 = vunpack.c.l.b16 %v331
    %v663 = vunpack.c.h.b16 %v331
    %v664 = vunpack.c.l.b16 %v332
    %v665 = vunpack.c.l.b16 %v333
    %v666 = vunpack.c.h.b16 %v333
    %v667 = vunpack.c.l.b16 %v334
    %v668 = vunpack.c.l.b16 %v335
    %v669 = vunpack.c.h.b16 %v335
    %v670 = vunpack.c.l.b16 %v336
    %v671 = vunpack.c.l.b16 %v337
    %v672 = vunpack.c.h.b16 %v337
    %v673 = vunpack.c.l.b16 %v338
    %v674 = vunpack.c.l.b16 %v339
    %v675 = vunpack.c.h.b16 %v339
    %v676 = vunpack.c.l.b16 %v340
    %v677 = vunpack.c.l.b16 %v341
    %v678 = vunpack.c.h.b16 %v341
    %v679 = vunpack.c.l.b16 %v342
    %v680 = vpack.c.b16 %v491, %v488
    %v681 = vpack.c.b16 %v492, %v489
    %v682 = vpack.c.b16 %v493, %v490
    %v683 = vpack.c.b16 %v497, %v494
    %v684 = vpack.c.b16 %v498, %v495
    %v685 = vpack.c.b16 %v499, %v496
    %v686 = vpack.c.b16 %v503, %v500
    %v687 = vpack.c.b16 %v504, %v501
    %v688 = vpack.c.b16 %v505, %v502
    %v689 = vpack.c.b16 %v509, %v506
    %v690 = vpack.c.b16 %v510, %v507
    %v691 = vpack.c.b16 %v511, %v508
    %v692 = vpack.c.b16 %v515, %v512
    %v693 = vpack.c.b16 %v516, %v513
    %v694 = vpack.c.b16 %v517, %v514
    %v695 = vpack.c.b16 %v521, %v518
    %v696 = vpack.c.b16 %v522, %v519
    %v697 = vpack.c.b16 %v523, %v520
    %v698 = vpack.c.b16 %v527, %v524
    %v699 = vpack.c.b16 %v528, %v525
    %v700 = vpack.c.b16 %v529, %v526
    %v701 = vpack.c.b16 %v533, %v530
    %v702 = vpack.c.b16 %v534, %v531
    %v703 = vpack.c.b16 %v535, %v532
    %v704 = vpack.c.b16 %v539, %v536
    %v705 = vpack.c.b16 %v540, %v537
    %v706 = vpack.c.b16 %v541, %v538
    %v707 = vpack.c.b16 %v545, %v542
    %v708 = vpack.c.b16 %v546, %v543
    %v709 = vpack.c.b16 %v547, %v544
    %v710 = vpack.c.b16 %v551, %v548
    %v711 = vpack.c.b16 %v552, %v549
    %v712 = vpack.c.b16 %v553, %v550
    %v713 = vpack.c.b16 %v557, %v554
    %v714 = vpack.c.b16 %v558, %v555
    %v715 = vpack.c.b16 %v559, %v556
    %v716 = vpack.c.b16 %v563, %v560
    %v717 = vpack.c.b16 %v564, %v561
    %v718 = vpack.c.b16 %v565, %v562
    %v719 = vpack.c.b16 %v569, %v566
    %v720 = vpack.c.b16 %v570, %v567
    %v721 = vpack.c.b16 %v571, %v568
    %v722 = vpack.c.b16 %v575, %v572
    %v723 = vpack.c.b16 %v576, %v573
    %v724 = vpack.c.b16 %v577, %v574
    %v725 = vpack.c.b16 %v581, %v578
    %v726 = vpack.c.b16 %v582, %v579
    %v727 = vpack.c.b16 %v583, %v580
    %v728 = vpack.c.b16 %v587, %v584
    %v729 = vpack.c.b16 %v588, %v585
    %v730 = vpack.c.b16 %v589, %v586
    %v731 = vpack.c.b16 %v593, %v590
    %v732 = vpack.c.b16 %v594, %v591
    %v733 = vpack.c.b16 %v595, %v592
    %v734 = vpack.c.b16 %v599, %v596
    %v735 = vpack.c.b16 %v600, %v597
    %v736 = vpack.c.b16 %v601, %v598
    %v737 = vpack.c.b16 %v605, %v602
    %v738 = vpack.c.b16 %v606, %v603
    %v739 = vpack.c.b16 %v607, %v604
    %v740 = vpack.c.b16 %v611, %v608
    %v741 = vpack.c.b16 %v612, %v609
    %v742 = vpack.c.b16 %v613, %v610
    %v743 = vpack.c.b16 %v617, %v614
    %v744 = vpack.c.b16 %v618, %v615
    %v745 = vpack.c.b16 %v619, %v616
    %v746 = vpack.c.b16 %v623, %v620
    %v747 = vpack.c.b16 %v624, %v621
    %v748 = vpack.c.b16 %v625, %v622
    %v749 = vpack.c.b16 %v629, %v626
    %v750 = vpack.c.b16 %v630, %v627
    %v751 = vpack.c.b16 %v631, %v628
    %v752 = vpack.c.b16 %v635, %v632
    %v753 = vpack.c.b16 %v636, %v633
    %v754 = vpack.c.b16 %v637, %v634
    %v755 = vpack.c.b16 %v641, %v638
    %v756 = vpack.c.b16 %v642, %v639
    %v757 = vpack.c.b16 %v643, %v640
    %v758 = vpack.c.b16 %v647, %v644
    %v759 = vpack.c.b16 %v648, %v645
    %v760 = vpack.c.b16 %v649, %v646
    %v761 = vpack.c.b16 %v653, %v650
    %v762 = vpack.c.b16 %v654, %v651
    %v763 = vpack.c.b16 %v655, %v652
    %v764 = vpack.c.b16 %v659, %v656
    %v765 = vpack.c.b16 %v660, %v657
    %v766 = vpack.c.b16 %v661, %v658
    %v767 = vpack.c.b16 %v665, %v662
    %v768 = vpack.c.b16 %v666, %v663
    %v769 = vpack.c.b16 %v667, %v664
    %v770 = vpack.c.b16 %v671, %v668
    %v771 = vpack.c.b16 %v672, %v669
    %v772 = vpack.c.b16 %v673, %v670
    %v773 = vpack.c.b16 %v677, %v674
    %v774 = vpack.c.b16 %v678, %v675
    %v775 = vpack.c.b16 %v679, %v676
    %872 = vmatprep.subr.bf16.mxu0 %v702
    %873 = vmatpush1.bf16.msra.mxu0 %v701
    %874 = vmatprep.subr.bf16.mxu0 %v699
    %875 = vmatpush1.bf16.msra.mxu0 %v698
    %876 = vmatprep.subr.bf16.mxu0 %v696
    %877 = vmatpush1.bf16.msra.mxu0 %v695
    %878 = vmatprep.subr.bf16.mxu0 %v693
    %879 = vmatpush1.bf16.msra.mxu0 %v692
    %880 = vmatprep.subr.bf16.mxu0 %v690
    %881 = vmatpush1.bf16.msra.mxu0 %v689
    %882 = vmatprep.subr.bf16.mxu0 %v687
    %883 = vmatpush1.bf16.msra.mxu0 %v686
    %884 = vmatprep.subr.bf16.mxu0 %v684
    %885 = vmatpush1.bf16.msra.mxu0 %v683
    %886 = vmatprep.subr.bf16.mxu0 %v681
    %887 = vmatpush1.bf16.msra.mxu0 %v680
    %888 = vmatprep.subr.bf16.mxu0 %v726
    %889 = vmatpush2.bf16.msra.mxu0 %v725
    %890 = vmatprep.subr.bf16.mxu0 %v723
    %891 = vmatpush2.bf16.msra.mxu0 %v722
    %892 = vmatprep.subr.bf16.mxu0 %v720
    %893 = vmatpush2.bf16.msra.mxu0 %v719
    %894 = vmatprep.subr.bf16.mxu0 %v717
    %895 = vmatpush2.bf16.msra.mxu0 %v716
    %896 = vmatprep.subr.bf16.mxu0 %v714
    %897 = vmatpush2.bf16.msra.mxu0 %v713
    %898 = vmatprep.subr.bf16.mxu0 %v711
    %899 = vmatpush2.bf16.msra.mxu0 %v710
    %900 = vmatprep.subr.bf16.mxu0 %v708
    %901 = vmatpush2.bf16.msra.mxu0 %v707
    %902 = vmatprep.subr.bf16.mxu0 %v705
    %903 = vmatpush2.bf16.msra.mxu0 %v704
    %904 = vmatprep.mubr.bf16.mxu0 %v212
    %905 = vmatmul.mubr.bf16.gmra.mxu0 %v211
    %v906 = vpop.f32.mrf.mxu0
    %v907 = vadd.f32 %v348, %v906
    %v908 = vpop.f32.mrf.mxu0
    %v909 = vadd.f32 %v352, %v908
    %v910 = vpop.f32.mrf.mxu0
    %v911 = vpop.f32.mrf.mxu0
    %912 = vdwg.mxu0
    %913 = vmatprep.subr.bf16.mxu0 %v750
    %914 = vmatpush1.bf16.msra.mxu0 %v749
    %915 = vmatprep.subr.bf16.mxu0 %v747
    %916 = vmatpush1.bf16.msra.mxu0 %v746
    %917 = vmatprep.subr.bf16.mxu0 %v744
    %918 = vmatpush1.bf16.msra.mxu0 %v743
    %919 = vmatprep.subr.bf16.mxu0 %v741
    %920 = vmatpush1.bf16.msra.mxu0 %v740
    %921 = vmatprep.subr.bf16.mxu0 %v738
    %922 = vmatpush1.bf16.msra.mxu0 %v737
    %923 = vmatprep.subr.bf16.mxu0 %v735
    %924 = vmatpush1.bf16.msra.mxu0 %v734
    %925 = vmatprep.subr.bf16.mxu0 %v732
    %926 = vmatpush1.bf16.msra.mxu0 %v731
    %927 = vmatprep.subr.bf16.mxu0 %v729
    %928 = vmatpush1.bf16.msra.mxu0 %v728
    %929 = vmatprep.subr.bf16.mxu0 %v774
    %930 = vmatpush2.bf16.msra.mxu0 %v773
    %931 = vmatprep.subr.bf16.mxu0 %v771
    %932 = vmatpush2.bf16.msra.mxu0 %v770
    %933 = vmatprep.subr.bf16.mxu0 %v768
    %934 = vmatpush2.bf16.msra.mxu0 %v767
    %935 = vmatprep.subr.bf16.mxu0 %v765
    %936 = vmatpush2.bf16.msra.mxu0 %v764
    %937 = vmatprep.subr.bf16.mxu0 %v762
    %938 = vmatpush2.bf16.msra.mxu0 %v761
    %939 = vmatprep.subr.bf16.mxu0 %v759
    %940 = vmatpush2.bf16.msra.mxu0 %v758
    %941 = vmatprep.subr.bf16.mxu0 %v756
    %942 = vmatpush2.bf16.msra.mxu0 %v755
    %943 = vmatprep.subr.bf16.mxu0 %v753
    %944 = vmatpush2.bf16.msra.mxu0 %v752
    %945 = vmatprep.mubr.bf16.mxu0 %v214
    %946 = vmatmul.mubr.bf16.gmra.mxu0 %v213
    %v947 = vpop.f32.mrf.mxu0
    %v948 = vadd.f32 %v907, %v947
    %v949 = vpop.f32.mrf.mxu0
    %v950 = vadd.f32 %v909, %v949
    %v951 = vpop.f32.mrf.mxu0
    %v952 = vpop.f32.mrf.mxu0
    %953 = vdwg.mxu0
    %954 = vmatprep.subr.bf16.mxu0 0
    %955 = vmatpush1.bf16.msra.mxu0 %v703
    %956 = vmatprep.subr.bf16.mxu0 0
    %957 = vmatpush1.bf16.msra.mxu0 %v700
    %958 = vmatprep.subr.bf16.mxu0 0
    %959 = vmatpush1.bf16.msra.mxu0 %v697
    %960 = vmatprep.subr.bf16.mxu0 0
    %961 = vmatpush1.bf16.msra.mxu0 %v694
    %962 = vmatprep.subr.bf16.mxu0 0
    %963 = vmatpush1.bf16.msra.mxu0 %v691
    %964 = vmatprep.subr.bf16.mxu0 0
    %965 = vmatpush1.bf16.msra.mxu0 %v688
    %966 = vmatprep.subr.bf16.mxu0 0
    %967 = vmatpush1.bf16.msra.mxu0 %v685
    %968 = vmatprep.subr.bf16.mxu0 0
    %969 = vmatpush1.bf16.msra.mxu0 %v682
    %970 = vmatprep.subr.bf16.mxu0 0
    %971 = vmatpush2.bf16.msra.mxu0 %v727
    %972 = vmatprep.subr.bf16.mxu0 0
    %973 = vmatpush2.bf16.msra.mxu0 %v724
    %974 = vmatprep.subr.bf16.mxu0 0
    %975 = vmatpush2.bf16.msra.mxu0 %v721
    %976 = vmatprep.subr.bf16.mxu0 0
    %977 = vmatpush2.bf16.msra.mxu0 %v718
    %978 = vmatprep.subr.bf16.mxu0 0
    %979 = vmatpush2.bf16.msra.mxu0 %v715
    %980 = vmatprep.subr.bf16.mxu0 0
    %981 = vmatpush2.bf16.msra.mxu0 %v712
    %982 = vmatprep.subr.bf16.mxu0 0
    %983 = vmatpush2.bf16.msra.mxu0 %v709
    %984 = vmatprep.subr.bf16.mxu0 0
    %985 = vmatpush2.bf16.msra.mxu0 %v706
    %986 = vmatprep.mubr.bf16.mxu0 %v212
    %987 = vmatmul.mubr.bf16.gmra.mxu0 %v211
    %v988 = vpop.f32.mrf.mxu0
    %v989 = vadd.f32 %v356, %v988
    %v990 = vpop.f32.mrf.mxu0
    %v991 = vpop.f32.mrf.mxu0
    %v992 = vpop.f32.mrf.mxu0
    %993 = vdwg.mxu0
    %994 = vmatprep.subr.bf16.mxu0 0
    %995 = vmatpush1.bf16.msra.mxu0 %v751
    %996 = vmatprep.subr.bf16.mxu0 0
    %997 = vmatpush1.bf16.msra.mxu0 %v748
    %998 = vmatprep.subr.bf16.mxu0 0
    %999 = vmatpush1.bf16.msra.mxu0 %v745
    %1000 = vmatprep.subr.bf16.mxu0 0
    %1001 = vmatpush1.bf16.msra.mxu0 %v742
    %1002 = vmatprep.subr.bf16.mxu0 0
    %1003 = vmatpush1.bf16.msra.mxu0 %v739
    %1004 = vmatprep.subr.bf16.mxu0 0
    %1005 = vmatpush1.bf16.msra.mxu0 %v736
    %1006 = vmatprep.subr.bf16.mxu0 0
    %1007 = vmatpush1.bf16.msra.mxu0 %v733
    %1008 = vmatprep.subr.bf16.mxu0 0
    %1009 = vmatpush1.bf16.msra.mxu0 %v730
    %1010 = vmatprep.subr.bf16.mxu0 0
    %1011 = vmatpush2.bf16.msra.mxu0 %v775
    %1012 = vmatprep.subr.bf16.mxu0 0
    %1013 = vmatpush2.bf16.msra.mxu0 %v772
    %1014 = vmatprep.subr.bf16.mxu0 0
    %1015 = vmatpush2.bf16.msra.mxu0 %v769
    %1016 = vmatprep.subr.bf16.mxu0 0
    %1017 = vmatpush2.bf16.msra.mxu0 %v766
    %1018 = vmatprep.subr.bf16.mxu0 0
    %1019 = vmatpush2.bf16.msra.mxu0 %v763
    %1020 = vmatprep.subr.bf16.mxu0 0
    %1021 = vmatpush2.bf16.msra.mxu0 %v760
    %1022 = vmatprep.subr.bf16.mxu0 0
    %1023 = vmatpush2.bf16.msra.mxu0 %v757
    %1024 = vmatprep.subr.bf16.mxu0 0
    %1025 = vmatpush2.bf16.msra.mxu0 %v754
    %1026 = vmatprep.mubr.bf16.mxu0 %v214
    %1027 = vmatmul.mubr.bf16.gmra.mxu0 %v213
    %v1028 = vpop.f32.mrf.mxu0
    %v1029 = vadd.f32 %v989, %v1028
    %v1030 = vpop.f32.mrf.mxu0
    %v1031 = vpop.f32.mrf.mxu0
    %v1032 = vpop.f32.mrf.mxu0
    %1033 = vdwg.mxu0
    %v1034 = vmax.f32 %v948, 0.0
    %v1035 = vmax.f32 %v950, 0.0
    %v1036 = vmax.f32 %v1029, 0.0
    %v1037 = vpack.c.bf16 %v1034, %v1034
    %v1038 = vpack.c.bf16 %v1035, %v1035
    %v1039 = vpack.c.bf16 %v1036, %v1036
    %v1040 = vld [vmem:[#allocation7] sm:$0xff]
    %v1041 = vld [vmem:[#allocation7 + $0x8] sm:$0xff]
    %v1042 = vld [vmem:[#allocation7 + $0x10] sm:$0xff]
    %v1043 = vld [vmem:[#allocation7 + $0x18] sm:$0xff]
    %v1044 = vld [vmem:[#allocation7 + $0x20] sm:$0xff]
    %v1045 = vld [vmem:[#allocation7 + $0x28] sm:$0xff]
    %v1046 = vld [vmem:[#allocation7 + $0x30] sm:$0xff]
    %v1047 = vld [vmem:[#allocation7 + $0x38] sm:$0xff]
    %v1048 = vld [vmem:[#allocation7 + $0x40] sm:$0xff]
    %v1049 = vld [vmem:[#allocation7 + $0x48] sm:$0xff]
    %v1050 = vld [vmem:[#allocation7 + $0x50] sm:$0xff]
    %v1051 = vld [vmem:[#allocation7 + $0x58] sm:$0xff]
    %v1052 = vld [vmem:[#allocation7 + $0x60] sm:$0xff]
    %v1053 = vld [vmem:[#allocation7 + $0x68] sm:$0xff]
    %v1054 = vld [vmem:[#allocation7 + $0x70] sm:$0xff]
    %v1055 = vld [vmem:[#allocation7 + $0x78] sm:$0xff]
    %v1056 = vld [vmem:[#allocation7 + $0x80] sm:$0xff]
    %v1057 = vld [vmem:[#allocation7 + $0x88] sm:$0xff]
    %v1058 = vld [vmem:[#allocation7 + $0x90] sm:$0xff]
    %v1059 = vld [vmem:[#allocation7 + $0x98] sm:$0xff]
    %v1060 = vld [vmem:[#allocation7 + $0xa0] sm:$0xff]
    %v1061 = vld [vmem:[#allocation7 + $0xa8] sm:$0xff]
    %v1062 = vld [vmem:[#allocation7 + $0xb0] sm:$0xff]
    %v1063 = vld [vmem:[#allocation7 + $0xb8] sm:$0xff]
    %v1064 = vld [vmem:[#allocation7 + $0xc0] sm:$0xff]
    %v1065 = vld [vmem:[#allocation7 + $0xc8] sm:$0xff]
    %v1066 = vld [vmem:[#allocation7 + $0xd0] sm:$0xff]
    %v1067 = vld [vmem:[#allocation7 + $0xd8] sm:$0xff]
    %v1068 = vld [vmem:[#allocation7 + $0xe0] sm:$0xff]
    %v1069 = vld [vmem:[#allocation7 + $0xe8] sm:$0xff]
    %v1070 = vld [vmem:[#allocation7 + $0xf0] sm:$0xff]
    %v1071 = vld [vmem:[#allocation7 + $0xf8] sm:$0xff]
    %v1072 = vld [vmem:[#allocation7 + $0x100] sm:$0xff]
    %v1073 = vld [vmem:[#allocation7 + $0x108] sm:$0xff]
    %v1074 = vld [vmem:[#allocation7 + $0x110] sm:$0xff]
    %v1075 = vld [vmem:[#allocation7 + $0x118] sm:$0xff]
    %v1076 = vld [vmem:[#allocation7 + $0x120] sm:$0xff]
    %v1077 = vld [vmem:[#allocation7 + $0x128] sm:$0xff]
    %v1078 = vld [vmem:[#allocation7 + $0x130] sm:$0xff]
    %v1079 = vld [vmem:[#allocation7 + $0x138] sm:$0xff]
    %v1080 = vld [vmem:[#allocation7 + $0x140] sm:$0xff]
    %v1081 = vld [vmem:[#allocation7 + $0x148] sm:$0xff]
    %v1082 = vld [vmem:[#allocation7 + $0x150] sm:$0xff]
    %v1083 = vld [vmem:[#allocation7 + $0x158] sm:$0xff]
    %v1084 = vld [vmem:[#allocation7 + $0x160] sm:$0xff]
    %v1085 = vld [vmem:[#allocation7 + $0x168] sm:$0xff]
    %v1086 = vld [vmem:[#allocation7 + $0x170] sm:$0xff]
    %v1087 = vld [vmem:[#allocation7 + $0x178] sm:$0xff]
    %v1088 = vld [vmem:[%s7] sm:$0x3]
    %v1090 = vlaneseq
    %v1091 = vshrl.u32 %v1090, 7
    %v1092 = vsub.s32 0, %v1091
    %v1093 = vrot.slane %v1088, %v1092
    %v1094 = vlaneseq
    %v1095 = vshrl.u32 %v1094, 7
    %v1096 = vsub.s32 1, %v1095
    %v1097 = vrot.slane %v1088, %v1096
    %v1148 = vunpack.c.l.b16 %v1040
    %v1149 = vunpack.c.h.b16 %v1040
    %v1150 = vunpack.c.l.b16 %v1041
    %v1151 = vunpack.c.h.b16 %v1041
    %v1152 = vunpack.c.l.b16 %v1042
    %v1153 = vunpack.c.h.b16 %v1042
    %v1154 = vunpack.c.l.b16 %v1043
    %v1155 = vunpack.c.h.b16 %v1043
    %v1156 = vunpack.c.l.b16 %v1044
    %v1157 = vunpack.c.h.b16 %v1044
    %v1158 = vunpack.c.l.b16 %v1045
    %v1159 = vunpack.c.h.b16 %v1045
    %v1160 = vunpack.c.l.b16 %v1046
    %v1161 = vunpack.c.h.b16 %v1046
    %v1162 = vunpack.c.l.b16 %v1047
    %v1163 = vunpack.c.h.b16 %v1047
    %v1164 = vunpack.c.l.b16 %v1048
    %v1165 = vunpack.c.h.b16 %v1048
    %v1166 = vunpack.c.l.b16 %v1049
    %v1167 = vunpack.c.h.b16 %v1049
    %v1168 = vunpack.c.l.b16 %v1050
    %v1169 = vunpack.c.h.b16 %v1050
    %v1170 = vunpack.c.l.b16 %v1051
    %v1171 = vunpack.c.h.b16 %v1051
    %v1172 = vunpack.c.l.b16 %v1052
    %v1173 = vunpack.c.h.b16 %v1052
    %v1174 = vunpack.c.l.b16 %v1053
    %v1175 = vunpack.c.h.b16 %v1053
    %v1176 = vunpack.c.l.b16 %v1054
    %v1177 = vunpack.c.h.b16 %v1054
    %v1178 = vunpack.c.l.b16 %v1055
    %v1179 = vunpack.c.h.b16 %v1055
    %v1180 = vunpack.c.l.b16 %v1056
    %v1181 = vunpack.c.h.b16 %v1056
    %v1182 = vunpack.c.l.b16 %v1057
    %v1183 = vunpack.c.h.b16 %v1057
    %v1184 = vunpack.c.l.b16 %v1058
    %v1185 = vunpack.c.h.b16 %v1058
    %v1186 = vunpack.c.l.b16 %v1059
    %v1187 = vunpack.c.h.b16 %v1059
    %v1188 = vunpack.c.l.b16 %v1060
    %v1189 = vunpack.c.h.b16 %v1060
    %v1190 = vunpack.c.l.b16 %v1061
    %v1191 = vunpack.c.h.b16 %v1061
    %v1192 = vunpack.c.l.b16 %v1062
    %v1193 = vunpack.c.h.b16 %v1062
    %v1194 = vunpack.c.l.b16 %v1063
    %v1195 = vunpack.c.h.b16 %v1063
    %v1196 = vunpack.c.l.b16 %v1064
    %v1197 = vunpack.c.h.b16 %v1064
    %v1198 = vunpack.c.l.b16 %v1065
    %v1199 = vunpack.c.h.b16 %v1065
    %v1200 = vunpack.c.l.b16 %v1066
    %v1201 = vunpack.c.h.b16 %v1066
    %v1202 = vunpack.c.l.b16 %v1067
    %v1203 = vunpack.c.h.b16 %v1067
    %v1204 = vunpack.c.l.b16 %v1068
    %v1205 = vunpack.c.h.b16 %v1068
    %v1206 = vunpack.c.l.b16 %v1069
    %v1207 = vunpack.c.h.b16 %v1069
    %v1208 = vunpack.c.l.b16 %v1070
    %v1209 = vunpack.c.h.b16 %v1070
    %v1210 = vunpack.c.l.b16 %v1071
    %v1211 = vunpack.c.h.b16 %v1071
    %v1212 = vunpack.c.l.b16 %v1072
    %v1213 = vunpack.c.h.b16 %v1072
    %v1214 = vunpack.c.l.b16 %v1073
    %v1215 = vunpack.c.h.b16 %v1073
    %v1216 = vunpack.c.l.b16 %v1074
    %v1217 = vunpack.c.h.b16 %v1074
    %v1218 = vunpack.c.l.b16 %v1075
    %v1219 = vunpack.c.h.b16 %v1075
    %v1220 = vunpack.c.l.b16 %v1076
    %v1221 = vunpack.c.h.b16 %v1076
    %v1222 = vunpack.c.l.b16 %v1077
    %v1223 = vunpack.c.h.b16 %v1077
    %v1224 = vunpack.c.l.b16 %v1078
    %v1225 = vunpack.c.h.b16 %v1078
    %v1226 = vunpack.c.l.b16 %v1079
    %v1227 = vunpack.c.h.b16 %v1079
    %v1228 = vunpack.c.l.b16 %v1080
    %v1229 = vunpack.c.h.b16 %v1080
    %v1230 = vunpack.c.l.b16 %v1081
    %v1231 = vunpack.c.h.b16 %v1081
    %v1232 = vunpack.c.l.b16 %v1082
    %v1233 = vunpack.c.h.b16 %v1082
    %v1234 = vunpack.c.l.b16 %v1083
    %v1235 = vunpack.c.h.b16 %v1083
    %v1236 = vunpack.c.l.b16 %v1084
    %v1237 = vunpack.c.h.b16 %v1084
    %v1238 = vunpack.c.l.b16 %v1085
    %v1239 = vunpack.c.h.b16 %v1085
    %v1240 = vunpack.c.l.b16 %v1086
    %v1241 = vunpack.c.h.b16 %v1086
    %v1242 = vunpack.c.l.b16 %v1087
    %v1243 = vunpack.c.h.b16 %v1087
    %v1244 = vpack.c.b16 %v1150, %v1148
    %v1245 = vpack.c.b16 %v1151, %v1149
    %v1246 = vpack.c.b16 %v1154, %v1152
    %v1247 = vpack.c.b16 %v1155, %v1153
    %v1248 = vpack.c.b16 %v1158, %v1156
    %v1249 = vpack.c.b16 %v1159, %v1157
    %v1250 = vpack.c.b16 %v1162, %v1160
    %v1251 = vpack.c.b16 %v1163, %v1161
    %v1252 = vpack.c.b16 %v1166, %v1164
    %v1253 = vpack.c.b16 %v1167, %v1165
    %v1254 = vpack.c.b16 %v1170, %v1168
    %v1255 = vpack.c.b16 %v1171, %v1169
    %v1256 = vpack.c.b16 %v1174, %v1172
    %v1257 = vpack.c.b16 %v1175, %v1173
    %v1258 = vpack.c.b16 %v1178, %v1176
    %v1259 = vpack.c.b16 %v1179, %v1177
    %v1260 = vpack.c.b16 %v1182, %v1180
    %v1261 = vpack.c.b16 %v1183, %v1181
    %v1262 = vpack.c.b16 %v1186, %v1184
    %v1263 = vpack.c.b16 %v1187, %v1185
    %v1264 = vpack.c.b16 %v1190, %v1188
    %v1265 = vpack.c.b16 %v1191, %v1189
    %v1266 = vpack.c.b16 %v1194, %v1192
    %v1267 = vpack.c.b16 %v1195, %v1193
    %v1268 = vpack.c.b16 %v1198, %v1196
    %v1269 = vpack.c.b16 %v1199, %v1197
    %v1270 = vpack.c.b16 %v1202, %v1200
    %v1271 = vpack.c.b16 %v1203, %v1201
    %v1272 = vpack.c.b16 %v1206, %v1204
    %v1273 = vpack.c.b16 %v1207, %v1205
    %v1274 = vpack.c.b16 %v1210, %v1208
    %v1275 = vpack.c.b16 %v1211, %v1209
    %v1276 = vpack.c.b16 %v1214, %v1212
    %v1277 = vpack.c.b16 %v1215, %v1213
    %v1278 = vpack.c.b16 %v1218, %v1216
    %v1279 = vpack.c.b16 %v1219, %v1217
    %v1280 = vpack.c.b16 %v1222, %v1220
    %v1281 = vpack.c.b16 %v1223, %v1221
    %v1282 = vpack.c.b16 %v1226, %v1224
    %v1283 = vpack.c.b16 %v1227, %v1225
    %v1284 = vpack.c.b16 %v1230, %v1228
    %v1285 = vpack.c.b16 %v1231, %v1229
    %v1286 = vpack.c.b16 %v1234, %v1232
    %v1287 = vpack.c.b16 %v1235, %v1233
    %v1288 = vpack.c.b16 %v1238, %v1236
    %v1289 = vpack.c.b16 %v1239, %v1237
    %v1290 = vpack.c.b16 %v1242, %v1240
    %v1291 = vpack.c.b16 %v1243, %v1241
    %1340 = vmatprep.subr.bf16.mxu0 %v1259
    %1341 = vmatpush1.bf16.msra.mxu0 %v1258
    %1342 = vmatprep.subr.bf16.mxu0 %v1257
    %1343 = vmatpush1.bf16.msra.mxu0 %v1256
    %1344 = vmatprep.subr.bf16.mxu0 %v1255
    %1345 = vmatpush1.bf16.msra.mxu0 %v1254
    %1346 = vmatprep.subr.bf16.mxu0 %v1253
    %1347 = vmatpush1.bf16.msra.mxu0 %v1252
    %1348 = vmatprep.subr.bf16.mxu0 %v1251
    %1349 = vmatpush1.bf16.msra.mxu0 %v1250
    %1350 = vmatprep.subr.bf16.mxu0 %v1249
    %1351 = vmatpush1.bf16.msra.mxu0 %v1248
    %1352 = vmatprep.subr.bf16.mxu0 %v1247
    %1353 = vmatpush1.bf16.msra.mxu0 %v1246
    %1354 = vmatprep.subr.bf16.mxu0 %v1245
    %1355 = vmatpush1.bf16.msra.mxu0 %v1244
    %1356 = vmatprep.subr.bf16.mxu0 %v1275
    %1357 = vmatpush2.bf16.msra.mxu0 %v1274
    %1358 = vmatprep.subr.bf16.mxu0 %v1273
    %1359 = vmatpush2.bf16.msra.mxu0 %v1272
    %1360 = vmatprep.subr.bf16.mxu0 %v1271
    %1361 = vmatpush2.bf16.msra.mxu0 %v1270
    %1362 = vmatprep.subr.bf16.mxu0 %v1269
    %1363 = vmatpush2.bf16.msra.mxu0 %v1268
    %1364 = vmatprep.subr.bf16.mxu0 %v1267
    %1365 = vmatpush2.bf16.msra.mxu0 %v1266
    %1366 = vmatprep.subr.bf16.mxu0 %v1265
    %1367 = vmatpush2.bf16.msra.mxu0 %v1264
    %1368 = vmatprep.subr.bf16.mxu0 %v1263
    %1369 = vmatpush2.bf16.msra.mxu0 %v1262
    %1370 = vmatprep.subr.bf16.mxu0 %v1261
    %1371 = vmatpush2.bf16.msra.mxu0 %v1260
    %1372 = vmatprep.mubr.bf16.mxu0 %v1038
    %1373 = vmatmul.mubr.bf16.gmra.mxu0 %v1037
    %v1374 = vpop.f32.mrf.mxu0
    %v1375 = vadd.f32 %v1093, %v1374
    %v1376 = vpop.f32.mrf.mxu0
    %v1377 = vadd.f32 %v1097, %v1376
    %v1378 = vpop.f32.mrf.mxu0
    %v1379 = vpop.f32.mrf.mxu0
    %1380 = vdwg.mxu0
    %1381 = vmatprep.subr.bf16.mxu0 %v1291
    %1382 = vmatpush1.bf16.msra.mxu0 %v1290
    %1383 = vmatprep.subr.bf16.mxu0 %v1289
    %1384 = vmatpush1.bf16.msra.mxu0 %v1288
    %1385 = vmatprep.subr.bf16.mxu0 %v1287
    %1386 = vmatpush1.bf16.msra.mxu0 %v1286
    %1387 = vmatprep.subr.bf16.mxu0 %v1285
    %1388 = vmatpush1.bf16.msra.mxu0 %v1284
    %1389 = vmatprep.subr.bf16.mxu0 %v1283
    %1390 = vmatpush1.bf16.msra.mxu0 %v1282
    %1391 = vmatprep.subr.bf16.mxu0 %v1281
    %1392 = vmatpush1.bf16.msra.mxu0 %v1280
    %1393 = vmatprep.subr.bf16.mxu0 %v1279
    %1394 = vmatpush1.bf16.msra.mxu0 %v1278
    %1395 = vmatprep.subr.bf16.mxu0 %v1277
    %1396 = vmatpush1.bf16.msra.mxu0 %v1276
    %1397 = vmatprep.subr.bf16.mxu0 0
    %1398 = vmatpush2.bf16.msra.mxu0 0
    %1399 = vmatprep.subr.bf16.mxu0 0
    %1400 = vmatpush2.bf16.msra.mxu0 0
    %1401 = vmatprep.subr.bf16.mxu0 0
    %1402 = vmatpush2.bf16.msra.mxu0 0
    %1403 = vmatprep.subr.bf16.mxu0 0
    %1404 = vmatpush2.bf16.msra.mxu0 0
    %1405 = vmatprep.subr.bf16.mxu0 0
    %1406 = vmatpush2.bf16.msra.mxu0 0
    %1407 = vmatprep.subr.bf16.mxu0 0
    %1408 = vmatpush2.bf16.msra.mxu0 0
    %1409 = vmatprep.subr.bf16.mxu0 0
    %1410 = vmatpush2.bf16.msra.mxu0 0
    %1411 = vmatprep.subr.bf16.mxu0 0
    %1412 = vmatpush2.bf16.msra.mxu0 0
    %1413 = vmatprep.mubr.bf16.mxu0 0
    %1414 = vmatmul.mubr.bf16.gmra.mxu0 %v1039
    %v1415 = vpop.f32.mrf.mxu0
    %v1416 = vadd.f32 %v1375, %v1415
    %v1417 = vpop.f32.mrf.mxu0
    %v1418 = vadd.f32 %v1377, %v1417
    %v1419 = vpop.f32.mrf.mxu0
    %v1420 = vpop.f32.mrf.mxu0
    %1421 = vdwg.mxu0
    %v1422 = vmax.f32 %v1418, -20.0
    %v1423 = vmin.f32 %v1422, 2.0
    %v1424 = vmul.f32 %v1423, 1.442695
    %v1425 = vpow.pop %v1424
    %v1426 = vstv %s72
    %v1427 = vmul.f32 %v1425, %v1426
    %v1428 = vadd.f32 %v1416, %v1427
    %v1429 = vtanh.pop %v1428
    %s1430 = smul.f32 %s72, -0.5
    %s1431 = smul.f32 %s1430, %s72
    %s1432 = ssub.f32 %s1431, 0.9189385
    %v1433 = vstv %s1432
    %v1434 = vsub.f32 %v1433, %v1423
    %v1435 = vmul.f32 %v1429, %v1429
    %v1436 = vsub.f32 1.0, %v1435
    %v1437 = vadd.f32 %v1436, 1e-06
    %v1438 = vlog2.pop %v1437
    %v1439 = vmul.f32 %v1438, 0.6931472
    %v1440 = vsub.f32 %v1434, %v1439
    %1441 = vst [vmem:[%s8] sm:$0xff] %v1429
    %1442 = vst [vmem:[%s8 + $0x8] sm:$0xff] %v1440
    // Predicated region
    $region46: #{policy_network_sac_forward.1} parent=1 // pred_check
      _
    $region47: #{policy_network_sac_forward.1} parent=1 // pred_check_branch
      %1444 = sbr.rel (0) target = $region49
    $region48: #{policy_network_sac_forward.1} parent=1 // pred_region
      _
    $region49: #{policy_network_sac_forward.1} parent=1 // pred_fallthru
      _
    // Predicated region
    $region50: #{policy_network_sac_forward.1} parent=1 // pred_check
      _
    $region51: #{policy_network_sac_forward.1} parent=1 // pred_check_branch
      %1446 = sbr.rel (0) target = $region53
    $region52: #{policy_network_sac_forward.1} parent=1 // pred_region
      _
    $region53: #{policy_network_sac_forward.1} parent=1 // pred_fallthru
      _
    %1447 = vsyncpa [#allocation4], 1
    %1448 = vsyncpa [#allocation6], 1

</llo_original>
